<compile_context>
chip_gen: v5e
topology: v5e:2x2
jax: 0.10.0
libtpu: 0.0.40
codegen_flags: <defaults>
</compile_context>

<pallas_src>
import functools

import jax
import jax.numpy as jnp
from jax.experimental import pallas as pl
from jax.experimental.pallas import tpu as pltpu

EPS = 1e-5  # PyTorch BatchNorm1d default


def _resblock_kernel(x_ref, w_ref, s_ref, o_ref, *, n_sub):
    # x_ref: (TN, Hp)   batch tile (mxu dtype: bf16 or f32), lane-dense features
    # w_ref: (Hp, Hp)   weight in (in, out) layout, BN scale folded in (mxu dtype)
    # s_ref: (1,  Hp)   BN shift = beta - mean*scale (f32)
    w = w_ref[...]
    shift = s_ref[...]
    tn = x_ref.shape[0]
    sub = tn // n_sub

    # Independent sub-tiles in one basic block: the LLO scheduler interleaves
    # sub-tile B's first matmul with sub-tile A's epilogue / second matmul.
    for t in range(n_sub):
        lo = t * sub
        x = x_ref[lo:lo + sub, :]

        # --- block 1: Linear -> BN(folded) -> ReLU -> (Dropout = identity) ---
        h = jnp.dot(x, w, preferred_element_type=jnp.float32)   # MXU
        h = jnp.maximum(h + shift, 0.0)                          # f32 epilogue (VPU)

        # --- block 2: same Sequential, shared weights ---
        h = jnp.dot(h.astype(w.dtype), w, preferred_element_type=jnp.float32)
        h = jnp.maximum(h + shift, 0.0)

        # residual add in f32, cast at the store
        o_ref[lo:lo + sub, :] = (h + x.astype(jnp.float32)).astype(o_ref.dtype)


def fold_resblock_params(w, gamma, beta, running_mean, running_var, *,
                         mxu_dtype=jnp.bfloat16):
    """One-time (init) fold of eval-mode BatchNorm into the Linear weight.

    w: PyTorch Linear weight, (out_features, in_features), bias=False.
    Returns (wp, sp, h_dim): padded/transposed weight (Hp, Hp) in `mxu_dtype`,
    shift (1, Hp) in f32, and the original feature dim.
    """
    h = w.shape[0]
    hp = pl.cdiv(h, 128) * 128                         # lane axis multiple of 128

    scale = gamma * jax.lax.rsqrt(running_var + EPS)   # (H,)
    shift = beta - running_mean * scale                # (H,)
    # y = x @ w.T ; per-out-feature scale folds into w's rows; pre-transpose so
    # the kernel feeds the MXU directly: (in, out) layout, no in-kernel w.T.
    w_folded = (w.astype(jnp.float32) * scale[:, None]).T

    if hp != h:
        w_folded = jnp.pad(w_folded, ((0, hp - h), (0, hp - h)))
        shift = jnp.pad(shift, (0, hp - h))

    wp = w_folded.astype(mxu_dtype)
    sp = shift.astype(jnp.float32).reshape(1, hp)
    return wp, sp, h


def resblock_forward(x, wp, sp, h_dim, *, block_n=512):
    """x: (N, H) ; wp/sp from fold_resblock_params. Returns (N, H) in x.dtype."""
    n, h = x.shape
    assert h == h_dim, "feature dim mismatch with folded params"
    hp = wp.shape[0]
    mxu_dtype = wp.dtype

    # ---- batch tile: sublane aligned, prefer >= 2 tiles (v7x: 2 TCs share the
    #      'parallel' grid axis), and prefer a tile that divides N (no padding).
    block_n = max(8, (int(block_n) // 8) * 8)
    tn = min(block_n, max(8, 8 * pl.cdiv(pl.cdiv(n, 2), 8)))
    n_pad = pl.cdiv(n, tn) * tn
    grid = (n_pad // tn,)

    # ---- cast / pad the activation only when actually needed
    xk = x if x.dtype == mxu_dtype else x.astype(mxu_dtype)
    needs_pad = (n_pad != n) or (hp != h)
    if needs_pad:
        xk = jnp.pad(xk, ((0, n_pad - n), (0, hp - h)))

    # ---- VMEM budget: single-buffered resident weight/shift + double-buffered
    #      x/out tiles, with margin; capped below physical capacity (v7x: 64 MiB).
    w_bytes = hp * hp * wp.dtype.itemsize                 # Buffered(1)
    s_bytes = 8 * hp * 4                                  # sublane-padded shift
    xo_bytes = 2 * tn * hp * (xk.dtype.itemsize + x.dtype.itemsize)
    vmem_bytes = int(1.5 * (w_bytes + s_bytes + xo_bytes)) + (4 << 20)
    try:
        cap = int(pltpu.get_tpu_info().vmem_capacity_bytes) - (16 << 20)
    except Exception:
        cap = 48 << 20
    vmem_bytes = int(min(max(vmem_bytes, 16 << 20), max(cap, 16 << 20)))

    cost = pl.CostEstimate(
        flops=4 * n_pad * hp * hp,  # two (TN,Hp)x(Hp,Hp) matmuls per batch row
        transcendentals=0,
        bytes_accessed=(xk.size * xk.dtype.itemsize
                        + wp.size * wp.dtype.itemsize
                        + sp.size * 4
                        + n_pad * hp * x.dtype.itemsize),
    )

    # split big tiles into 2 sub-tiles for MXU/VPU interleave (keep sublane align)
    n_sub = 2 if (tn >= 256 and tn % 16 == 0) else 1
    kernel = functools.partial(_resblock_kernel, n_sub=n_sub)

    out = pl.pallas_call(
        kernel,
        out_shape=jax.ShapeDtypeStruct((n_pad, hp), x.dtype),
        grid=grid,
        in_specs=[
            pl.BlockSpec((tn, hp), lambda i: (i, 0)),     # x: tiled over batch
            pl.BlockSpec((hp, hp), lambda i: (0, 0),      # resident folded weight
                         pipeline_mode=pl.Buffered(1)),   #   single-buffered
            pl.BlockSpec((1, hp), lambda i: (0, 0),       # resident shift
                         pipeline_mode=pl.Buffered(1)),
        ],
        out_specs=pl.BlockSpec((tn, hp), lambda i: (i, 0)),
        compiler_params=pltpu.CompilerParams(
            dimension_semantics=("parallel",),            # independent batch tiles
            vmem_limit_bytes=vmem_bytes,
        ),
        cost_estimate=cost,
    )(xk, wp, sp)

    if needs_pad:
        out = out[:n, :h]
    return out


def reference_forward(x, w, gamma, beta, running_mean, running_var):
    """Pure-JAX reference of the eval-mode PyTorch forward."""
    def fc(z):
        z = z @ w.T
        z = (z - running_mean) / jnp.sqrt(running_var + EPS) * gamma + beta
        return jnp.maximum(z, 0.0)  # Dropout = identity at eval
    return fc(fc(x)) + x


if __name__ == "__main__":
    key = jax.random.PRNGKey(0)
    k_x, k_w, k_g, k_b, k_m, k_v = jax.random.split(key, 6)

    batch, h_dim = 8, 32

    x = jax.random.normal(k_x, (batch, h_dim), dtype=jnp.float32)
    # Linear weight, PyTorch layout (out_features, in_features), bias=False
    w = jax.random.normal(k_w, (h_dim, h_dim), dtype=jnp.float32) * 0.1
    # BatchNorm1d parameters / running stats (deterministic, non-trivial)
    gamma = 1.0 + 0.1 * jax.random.normal(k_g, (h_dim,), dtype=jnp.float32)
    beta = 0.1 * jax.random.normal(k_b, (h_dim,), dtype=jnp.float32)
    running_mean = 0.1 * jax.random.normal(k_m, (h_dim,), dtype=jnp.float32)
    running_var = jnp.abs(1.0 + 0.1 * jax.random.normal(k_v, (h_dim,), dtype=jnp.float32))

    ref = reference_forward(x, w, gamma, beta, running_mean, running_var)

    # ---- f32 MXU path: bit-accurate vs the f32 reference (single-tile grid) ----
    wp32, sp32, _ = fold_resblock_params(
        w, gamma, beta, running_mean, running_var, mxu_dtype=jnp.float32)
    out32 = jax.block_until_ready(resblock_forward(x, wp32, sp32, h_dim))
    assert out32.shape == (batch, h_dim)
    assert jnp.allclose(out32, ref, atol=1e-4, rtol=1e-4), "mismatch vs reference (f32)"

    # ---- bf16 MXU path (default: halves weight VMEM + activation HBM traffic) ----
    wp16, sp16, _ = fold_resblock_params(w, gamma, beta, running_mean, running_var)
    out16 = jax.block_until_ready(resblock_forward(x, wp16, sp16, h_dim))
    assert out16.shape == (batch, h_dim)
    assert jnp.allclose(out16, ref, atol=1e-1, rtol=5e-2), "mismatch vs reference (bf16)"

    # ---- multi-tile batch grid (exercises the parallel batch tiling path) ----
    batch2 = 48
    x2 = jax.random.normal(jax.random.PRNGKey(1), (batch2, h_dim), dtype=jnp.float32)
    ref2 = reference_forward(x2, w, gamma, beta, running_mean, running_var)
    out2 = jax.block_until_ready(
        resblock_forward(x2, wp16, sp16, h_dim, block_n=16))
    assert out2.shape == (batch2, h_dim)
    assert jnp.allclose(out2, ref2, atol=1e-1, rtol=5e-2), "mismatch vs reference (tiled)"

    print("KERNEL_OK")
</pallas_src>

<mosaic_0001>
module attributes {stable_mosaic.version = 11 : i64} {
  func.func @_resblock_kernel(%arg0: i32, %arg1: memref<8x128xf32, #tpu.memory_space<vmem>>, %arg2: memref<128x128xf32, #tpu.memory_space<vmem>>, %arg3: memref<1x128xf32, #tpu.memory_space<vmem>>, %arg4: memref<8x128xf32, #tpu.memory_space<vmem>>) attributes {dimension_semantics = [#tpu.dimension_semantics<parallel>], iteration_bounds = array<i64: 1>, scalar_prefetch = 0 : i64, scratch_operands = 0 : i64, tpu.core_type = #tpu.core_type<tc>, window_params = [{transform_indices = @transform_0, window_bounds = array<i64: 8, 128>}, {pipeline_mode = #tpu.pipeline_mode<synchronous>, transform_indices = @transform_1, window_bounds = array<i64: 128, 128>}, {pipeline_mode = #tpu.pipeline_mode<synchronous>, transform_indices = @transform_2, window_bounds = array<i64: 1, 128>}, {transform_indices = @transform_3, window_bounds = array<i64: 8, 128>}]} {
    %c0 = arith.constant 0 : index
    %c0_0 = arith.constant 0 : index
    %0 = vector.load %arg2[%c0, %c0_0] : memref<128x128xf32, #tpu.memory_space<vmem>>, vector<128x128xf32>
    %c0_1 = arith.constant 0 : index
    %c0_2 = arith.constant 0 : index
    %1 = vector.load %arg3[%c0_1, %c0_2] : memref<1x128xf32, #tpu.memory_space<vmem>>, vector<1x128xf32>
    %c0_3 = arith.constant 0 : index
    %c0_4 = arith.constant 0 : index
    %2 = vector.load %arg1[%c0_3, %c0_4] : memref<8x128xf32, #tpu.memory_space<vmem>>, vector<8x128xf32>
    %cst = arith.constant dense<0.000000e+00> : vector<8x128xf32>
    %3 = tpu.matmul %2, %0, %cst {dimension_numbers = #tpu.dot_dimension_numbers<[1], [0], [0], [1], [0, 0, 1, 1], [], []>} : vector<8x128xf32>, vector<128x128xf32>, vector<8x128xf32> -> vector<8x128xf32>
    %4 = vector.broadcast %1 : vector<1x128xf32> to vector<8x128xf32>
    %5 = arith.addf %3, %4 : vector<8x128xf32>
    %cst_5 = arith.constant 0.000000e+00 : f32
    %6 = vector.broadcast %cst_5 : f32 to vector<8x128xf32>
    %7 = arith.maximumf %5, %6 : vector<8x128xf32>
    %cst_6 = arith.constant dense<0.000000e+00> : vector<8x128xf32>
    %8 = tpu.matmul %7, %0, %cst_6 {dimension_numbers = #tpu.dot_dimension_numbers<[1], [0], [0], [1], [0, 0, 1, 1], [], []>} : vector<8x128xf32>, vector<128x128xf32>, vector<8x128xf32> -> vector<8x128xf32>
    %9 = vector.broadcast %1 : vector<1x128xf32> to vector<8x128xf32>
    %10 = arith.addf %8, %9 : vector<8x128xf32>
    %cst_7 = arith.constant 0.000000e+00 : f32
    %11 = vector.broadcast %cst_7 : f32 to vector<8x128xf32>
    %12 = arith.maximumf %10, %11 : vector<8x128xf32>
    %13 = arith.addf %12, %2 : vector<8x128xf32>
    %c0_8 = arith.constant 0 : index
    %c0_9 = arith.constant 0 : index
    %14 = vector.load %arg4[%c0_8, %c0_9] : memref<8x128xf32, #tpu.memory_space<vmem>>, vector<8x128xf32>
    tpu.vector_store %arg4[%c0_8, %c0_9], %13 {strides = array<i32>} : memref<8x128xf32, #tpu.memory_space<vmem>>, vector<8x128xf32>,
    return
  }
  func.func @transform_0(%arg0: i32) -> (i32, i32) {
    %c0_i32 = arith.constant 0 : i32
    %c0_i32_0 = arith.constant 0 : i32
    return %arg0, %c0_i32 : i32, i32
  }
  func.func @transform_1(%arg0: i32) -> (i32, i32) {
    %c0_i32 = arith.constant 0 : i32
    %c0_i32_0 = arith.constant 0 : i32
    %c0_i32_1 = arith.constant 0 : i32
    return %c0_i32, %c0_i32_0 : i32, i32
  }
  func.func @transform_2(%arg0: i32) -> (i32, i32) {
    %c0_i32 = arith.constant 0 : i32
    %c0_i32_0 = arith.constant 0 : i32
    %c0_i32_1 = arith.constant 0 : i32
    return %c0_i32, %c0_i32_0 : i32, i32
  }
  func.func @transform_3(%arg0: i32) -> (i32, i32) {
    %c0_i32 = arith.constant 0 : i32
    %c0_i32_0 = arith.constant 0 : i32
    return %arg0, %c0_i32 : i32, i32
  }
}

</mosaic_0001>

<llo_original>
// kernel: tpu_custom_call.1
$region0: #{tpu_custom_call.1}
  #allocation0 [shape = 'u32[]', space=smem, size = 0x4, offset = 0x4, fixed_abs, tag = 'smem constant byte address 0x4 - core index']
  #allocation1 [shape = 'u32[72,128]{1,0:T(1,128)}', space=vmem, size = 0x9000, scoped, tag = 'internal scratch']
  %s0 = inlined_call_operand.hbm [shape: f32[8,128], index: 0, kind: input, shape index: {}]
  %s1 = inlined_call_operand.hbm [shape: f32[128,128], index: 1, kind: input, shape index: {}]
  %s2 = inlined_call_operand.vmem [shape: f32[1,128], index: 2, kind: input, shape index: {}]
  %s3 = inlined_call_operand.hbm [shape: f32[8,128], index: 3, kind: output, shape index: {}]
  %s4 = sld [smem:[#allocation0]]
  $region30: #{tpu_custom_call.1} parent=0
    _
  %s6 = ssub.s32 1, %s4
  %s7 = scalar_select 0, %s6, %s4
  $region1: #{tpu_custom_call.1} parent=0
    #allocation2 [shape = 'u8[4096]{0}', space=vmem, size = 0x1000, scoped, tag = 'input window, operand 0, single buffered']
    #allocation3 [shape = 's32[1]{0}', space=sflag, size = 0x4, scoped, tag = 'scoped memory for tpu_custom_call.1']
    #allocation4 [shape = 's32[1]{0}', space=sflag, size = 0x4, scoped, tag = 'scoped memory for tpu_custom_call.1']
    #allocation5 [shape = 'u8[65536]{0}', space=vmem, size = 0x10000, scoped, tag = 'input window, operand 1, single buffered']
    #allocation6 [shape = 's32[1]{0}', space=sflag, size = 0x4, scoped, tag = 'scoped memory for tpu_custom_call.1']
    #allocation7 [shape = 'u8[4096]{0}', space=vmem, size = 0x1000, scoped, tag = 'output window, operand 0, single buffered']
    %8 = vsyncpa [#allocation3], 0
    %9 = vsyncpa [#allocation6], 0
    %10 = vsyncpa [#allocation4], 0
    // Predicated region
    $region2: #{tpu_custom_call.1} parent=1 // pred_check
      _
    $region3: #{tpu_custom_call.1} parent=1 // pred_check_branch
      %12 = sbr.rel (0) target = $region5
    $region4: #{tpu_custom_call.1} parent=1 // pred_region
      %14 = vsyncadd [#allocation3], 0
      %s16 = sshll.u32 %s0, 4
      %s17 = int_to_ptr.hbm [resolvable:$true] %s16
      %s18 = sshll.u32 [#allocation2], 4
      %s19 = int_to_ptr.vmem [resolvable:$true] %s18
      %21 = dma.hbm_to_vmem [thread:$0]  %s17, 128, %s19, [#allocation3]
    $region5: #{tpu_custom_call.1} parent=1 // pred_fallthru
      _
    // Predicated region
    $region6: #{tpu_custom_call.1} parent=1 // pred_check
      _
    $region7: #{tpu_custom_call.1} parent=1 // pred_check_branch
      %23 = sbr.rel (0) target = $region9
    $region8: #{tpu_custom_call.1} parent=1 // pred_region
      %25 = vsyncadd [#allocation6], 0
      %s26 = sshll.u32 %s1, 4
      %s27 = int_to_ptr.hbm [resolvable:$true] %s26
      %s28 = sshll.u32 [#allocation5], 4
      %s29 = int_to_ptr.vmem [resolvable:$true] %s28
      %34 = dma.hbm_to_vmem [thread:$0]  %s27, 2048, %s29, [#allocation6], 128, 128, 8
    $region9: #{tpu_custom_call.1} parent=1 // pred_fallthru
      _
    // Predicated region
    $region10: #{tpu_custom_call.1} parent=1 // pred_check
      _
    $region11: #{tpu_custom_call.1} parent=1 // pred_check_branch
      %36 = sbr.rel (0) target = $region13
    $region12: #{tpu_custom_call.1} parent=1 // pred_region
      _
    $region13: #{tpu_custom_call.1} parent=1 // pred_fallthru
      _
    // Predicated region
    $region14: #{tpu_custom_call.1} parent=1 // pred_check
      _
    $region15: #{tpu_custom_call.1} parent=1 // pred_check_branch
      %38 = sbr.rel (0) target = $region17
    $region16: #{tpu_custom_call.1} parent=1 // pred_region
      %40 = dma.done [#allocation3], 128
    $region17: #{tpu_custom_call.1} parent=1 // pred_fallthru
      _
    // Predicated region
    $region18: #{tpu_custom_call.1} parent=1 // pred_check
      _
    $region19: #{tpu_custom_call.1} parent=1 // pred_check_branch
      %42 = sbr.rel (0) target = $region21
    $region20: #{tpu_custom_call.1} parent=1 // pred_region
      %44 = dma.done [#allocation6], 2048
    $region21: #{tpu_custom_call.1} parent=1 // pred_fallthru
      _
    %v45 = vld [vmem:[#allocation5] sm:$0xff]
    %v46 = vld [vmem:[#allocation5 + $0x8] sm:$0xff]
    %v47 = vld [vmem:[#allocation5 + $0x10] sm:$0xff]
    %v48 = vld [vmem:[#allocation5 + $0x18] sm:$0xff]
    %v49 = vld [vmem:[#allocation5 + $0x20] sm:$0xff]
    %v50 = vld [vmem:[#allocation5 + $0x28] sm:$0xff]
    %v51 = vld [vmem:[#allocation5 + $0x30] sm:$0xff]
    %v52 = vld [vmem:[#allocation5 + $0x38] sm:$0xff]
    %v53 = vld [vmem:[#allocation5 + $0x40] sm:$0xff]
    %v54 = vld [vmem:[#allocation5 + $0x48] sm:$0xff]
    %v55 = vld [vmem:[#allocation5 + $0x50] sm:$0xff]
    %v56 = vld [vmem:[#allocation5 + $0x58] sm:$0xff]
    %v57 = vld [vmem:[#allocation5 + $0x60] sm:$0xff]
    %v58 = vld [vmem:[#allocation5 + $0x68] sm:$0xff]
    %v59 = vld [vmem:[#allocation5 + $0x70] sm:$0xff]
    %v60 = vld [vmem:[#allocation5 + $0x78] sm:$0xff]
    %v61 = vld [vmem:[%s2] sm:$0x1]
    %v62 = vld [vmem:[#allocation2] sm:$0xff]
    %v64 = vperm.slane %v61, 0
    %66 = vmatpush.msra.mxu0 %v60
    %67 = vmatpush.msra.mxu0 %v59
    %68 = vmatpush.msra.mxu0 %v58
    %69 = vmatpush.msra.mxu0 %v57
    %70 = vmatpush.msra.mxu0 %v56
    %71 = vmatpush.msra.mxu0 %v55
    %72 = vmatpush.msra.mxu0 %v54
    %73 = vmatpush.msra.mxu0 %v53
    %74 = vmatpush.msra.mxu0 %v52
    %75 = vmatpush.msra.mxu0 %v51
    %76 = vmatpush.msra.mxu0 %v50
    %77 = vmatpush.msra.mxu0 %v49
    %78 = vmatpush.msra.mxu0 %v48
    %79 = vmatpush.msra.mxu0 %v47
    %80 = vmatpush.msra.mxu0 %v46
    %81 = vmatpush.msra.mxu0 %v45
    %82 = vmatmul.f32.gmra.mxu0 %v62
    %v83 = vpop.f32.mrf.mxu0
    %v84 = vadd.f32 %v64, %v83
    %85 = vdwg.mxu0
    %v86 = vmax.f32 %v84, 0.0
    %87 = vmatpush.msra.mxu0 %v60
    %88 = vmatpush.msra.mxu0 %v59
    %89 = vmatpush.msra.mxu0 %v58
    %90 = vmatpush.msra.mxu0 %v57
    %91 = vmatpush.msra.mxu0 %v56
    %92 = vmatpush.msra.mxu0 %v55
    %93 = vmatpush.msra.mxu0 %v54
    %94 = vmatpush.msra.mxu0 %v53
    %95 = vmatpush.msra.mxu0 %v52
    %96 = vmatpush.msra.mxu0 %v51
    %97 = vmatpush.msra.mxu0 %v50
    %98 = vmatpush.msra.mxu0 %v49
    %99 = vmatpush.msra.mxu0 %v48
    %100 = vmatpush.msra.mxu0 %v47
    %101 = vmatpush.msra.mxu0 %v46
    %102 = vmatpush.msra.mxu0 %v45
    %103 = vmatmul.f32.gmra.mxu0 %v86
    %v104 = vpop.f32.mrf.mxu0
    %v105 = vadd.f32 %v64, %v104
    %106 = vdwg.mxu0
    %v107 = vmax.f32 %v105, 0.0
    %v108 = vadd.f32 %v107, %v62
    %109 = vst [vmem:[#allocation7] sm:$0xff] %v108
    // Predicated region
    $region22: #{tpu_custom_call.1} parent=1 // pred_check
      _
    $region23: #{tpu_custom_call.1} parent=1 // pred_check_branch
      %111 = sbr.rel (0) target = $region25
    $region24: #{tpu_custom_call.1} parent=1 // pred_region
      %113 = vsyncadd [#allocation4], 0
      %s115 = sshll.u32 [#allocation7], 4
      %s116 = int_to_ptr.vmem [resolvable:$true] %s115
      %s117 = sshll.u32 %s3, 4
      %s118 = int_to_ptr.hbm [resolvable:$true] %s117
      %120 = dma.vmem_to_hbm [thread:$0]  %s116, 128, %s118, [#allocation4]
    $region25: #{tpu_custom_call.1} parent=1 // pred_fallthru
      _
    // Predicated region
    $region26: #{tpu_custom_call.1} parent=1 // pred_check
      _
    $region27: #{tpu_custom_call.1} parent=1 // pred_check_branch
      %122 = sbr.rel (0) target = $region29
    $region28: #{tpu_custom_call.1} parent=1 // pred_region
      %124 = dma.done [#allocation4], 128
    $region29: #{tpu_custom_call.1} parent=1 // pred_fallthru
      _
    %125 = vsyncpa [#allocation3], 1
    %126 = vsyncpa [#allocation6], 1
    %127 = vsyncpa [#allocation4], 1

</llo_original>
